<compile_context>
chip_gen: v6e
topology: v6e:2x2x1
jax: 0.10.0
libtpu: 0.0.40
codegen_flags: <defaults>
</compile_context>

<pallas_src>
import jax
import jax.numpy as jnp
from jax.experimental import pallas as pl
from jax.experimental.pallas import tpu as pltpu


def _round_up(x, m):
    return (x + m - 1) // m * m


def _cdiv(a, b):
    return (a + b - 1) // b


def _linear_kernel(x_ref, w_ref, b_ref, o_ref, acc_ref):
    """One (j, k) grid step of Y = X @ W + b; bf16 MXU matmul, f32 accumulation."""
    k = pl.program_id(1)

    @pl.when(k == 0)
    def _():
        acc_ref[...] = jnp.zeros_like(acc_ref)

    acc_ref[...] += jnp.dot(
        x_ref[...], w_ref[...], preferred_element_type=jnp.float32
    )

    @pl.when(k == pl.num_programs(1) - 1)
    def _():
        # Bias add + final cast in f32 on the tiny (M, tn) accumulator.
        o_ref[...] = (acc_ref[...] + b_ref[...]).astype(o_ref.dtype)


def prepare_linear(w, b, *, tk_max=8192, w_vmem_budget_bytes=24 * 1024 * 1024):
    """One-time (per weight update) tile selection + pad + bf16 cast of the streamed W.

    w: [K, N] float  (transpose of the torch Linear weight [N, K])
    b: [N]    float
    Returns a dict consumed by linear_pallas.  Doing this once keeps the kernel's
    2-byte weight stream as the only per-forward HBM traffic for W.
    """
    K, N = w.shape
    assert b.shape == (N,)

    # ---- N tiling: lane-dense output, always >= 2 tiles so both v7x TCs get work ----
    N_pad = _round_up(N, 256)
    tn = N_pad // 2
    while tn > 512 and tn % 256 == 0:      # keep W tiles from getting too wide
        tn //= 2

    # ---- K tiling: cap tk so the (triple-buffered) W tile fits v7x's 64 MiB VMEM ----
    tk_cap = max(512, (w_vmem_budget_bytes // (3 * tn * 2)) // 128 * 128)
    tk_lim = min(tk_max, tk_cap)

    # Even split of the lane-aligned K (minimizes zero-padding on the W stream).
    K128 = _round_up(K, 128)
    nk = _cdiv(K128, tk_lim)
    tk = _round_up(_cdiv(K128, nk), 128)
    K_pad = nk * tk

    # bf16 on the streamed weight (halves the dominant HBM traffic); zero pad is exact.
    w_p = jnp.zeros((K_pad, N_pad), jnp.bfloat16).at[:K, :N].set(w.astype(jnp.bfloat16))
    b_p = jnp.zeros((1, N_pad), jnp.float32).at[0, :N].set(b.astype(jnp.float32))

    return dict(w_p=w_p, b_p=b_p, K=K, N=N, K_pad=K_pad, N_pad=N_pad, tk=tk, tn=tn)


def linear_pallas(x2d, prep, *, out_dtype=jnp.float32):
    """y = x2d @ W + b with W/b pre-padded by prepare_linear.

    x2d: [M, K] float (flattened / masked activations; M = batch, tiny).
    """
    M, K = x2d.shape
    assert K == prep["K"], (K, prep["K"])
    K_pad, N_pad = prep["K_pad"], prep["N_pad"]
    tk, tn, N = prep["tk"], prep["tn"], prep["N"]
    w_p, b_p = prep["w_p"], prep["b_p"]

    # Per-call X pad/cast only (M*K_pad*2 bytes -- negligible vs the weight stream).
    x_p = jnp.zeros((M, K_pad), jnp.bfloat16).at[:, :K].set(x2d.astype(jnp.bfloat16))

    jn, kn = N_pad // tn, K_pad // tk
    n_steps = jn * kn
    w_buffers = 3 if n_steps >= 3 else 2   # deeper buffering only if the pipeline is long enough

    # VMEM accounting (sized to the actual working set, not a flat number, so v7x's
    # 64 MiB VMEM keeps full multi-buffering).
    m8 = max(_round_up(M, 8), 8)
    vmem_bytes = (w_buffers * tk * tn * 2      # W tiles (the dominant stream)
                  + 2 * m8 * tk * 2            # double-buffered X strip
                  + 2 * 8 * tn * 4             # bias row
                  + 2 * m8 * tn * 4            # output tile
                  + m8 * tn * 4)               # f32 accumulator scratch
    vmem_limit = int(min(44 * 1024 * 1024,
                         max(24 * 1024 * 1024,
                             vmem_bytes + vmem_bytes // 4 + 4 * 1024 * 1024)))

    cost = pl.CostEstimate(
        flops=2 * M * K_pad * N_pad,
        transcendentals=0,
        bytes_accessed=(jn * M * K_pad * 2       # X is re-streamed once per N tile
                        + K_pad * N_pad * 2      # the W stream (dominant)
                        + N_pad * 4
                        + M * N_pad * 4),
    )

    y_pad = pl.pallas_call(
        _linear_kernel,
        out_shape=jax.ShapeDtypeStruct((M, N_pad), out_dtype),
        grid_spec=pltpu.PrefetchScalarGridSpec(
            num_scalar_prefetch=0,
            grid=(jn, kn),                       # (parallel N, reduction K last)
            in_specs=[
                pl.BlockSpec((M, tk), lambda j, k: (0, k)),      # X strip (tiny)
                pl.BlockSpec((tk, tn), lambda j, k: (k, j),      # W tile (the HBM stream)
                             pipeline_mode=pl.Buffered(w_buffers)),
                pl.BlockSpec((1, tn), lambda j, k: (0, j)),      # bias row
            ],
            out_specs=pl.BlockSpec((M, tn), lambda j, k: (0, j)),
            scratch_shapes=[pltpu.VMEM((M, tn), jnp.float32)],
        ),
        compiler_params=pltpu.CompilerParams(
            dimension_semantics=("parallel", "arbitrary"),
            vmem_limit_bytes=vmem_limit,
        ),
        cost_estimate=cost,
    )(x_p, w_p, b_p)

    return y_pad[:, :N]


def make_mask_mlp(w_torch, b, mask=None, *, tk_max=8192):
    """MaskMLP 'constructor' analogue: caches the padded bf16 weight ONCE.

    w_torch: [out_features, in_features] (PyTorch nn.Linear layout).
    mask   : optional int index vector (unit_idx), applied to the flattened input.
    Returns forward(x_nchw) -> [B, out_features].
    """
    prep = prepare_linear(jnp.asarray(w_torch).T, jnp.asarray(b), tk_max=tk_max)
    mask = None if mask is None else jnp.asarray(mask, jnp.int32)

    def forward(x_nchw):
        B = x_nchw.shape[0]
        flat = x_nchw.reshape(B, -1)              # torch.flatten(x, 1)
        if mask is not None:
            flat = jnp.take(flat, mask, axis=1)   # flat_units[:, self.mask] (glue, tiny)
        return linear_pallas(flat, prep)

    return forward


if __name__ == "__main__":
    key = jax.random.PRNGKey(0)
    k_x, k_w, k_b, k_w2, k_b2 = jax.random.split(key, 5)

    # Small shapes consistent with the module: x is a conv feature map (NCHW).
    # D_mask / N_OUT are deliberately NOT multiples of 128 (like the real 5000 / 1000)
    # to exercise the even-split pad + slice path.
    B, C, H, W = 2, 4, 16, 16
    D_full = C * H * W            # 1024  (the "25088" / unmasked path, scaled down)
    D_mask = 500                  # the "5000" / masked path, scaled down
    N_OUT = 250                   # the "1000" output classes, scaled down

    x = jax.random.normal(k_x, (B, C, H, W), dtype=jnp.float32)

    # Deterministic mask: every other flattened unit (length D_mask, indices < D_full).
    mask = jnp.arange(0, 2 * D_mask, 2, dtype=jnp.int32)

    # --- masked branch (unit_idx is not None): Linear(D_mask, N_OUT) ---
    w_t = 0.02 * jax.random.normal(k_w, (N_OUT, D_mask), dtype=jnp.float32)  # torch layout [out, in]
    b_m = 0.01 * jax.random.normal(k_b, (N_OUT,), dtype=jnp.float32)
    masked_mlp = make_mask_mlp(w_t, b_m, mask)          # weight pad/cast happens once, here
    y_masked = masked_mlp(x)

    # --- unmasked branch (unit_idx is None): Linear(D_full, N_OUT) ---
    w2_t = 0.02 * jax.random.normal(k_w2, (N_OUT, D_full), dtype=jnp.float32)
    b2 = 0.01 * jax.random.normal(k_b2, (N_OUT,), dtype=jnp.float32)
    full_mlp = make_mask_mlp(w2_t, b2, None)
    y_full = full_mlp(x)

    jax.block_until_ready(y_masked)
    jax.block_until_ready(y_full)

    # Reference check (plain JAX, f32). Kernel uses bf16 operands with f32
    # accumulation, so use a loose (but still tight for these scales) tolerance.
    ref_masked = x.reshape(B, -1)[:, mask] @ w_t.T + b_m
    ref_full = x.reshape(B, -1) @ w2_t.T + b2
    assert y_masked.shape == (B, N_OUT) and y_full.shape == (B, N_OUT)
    assert jnp.max(jnp.abs(y_masked - ref_masked)) < 5e-2
    assert jnp.max(jnp.abs(y_full - ref_full)) < 5e-2

    print("KERNEL_OK")
</pallas_src>

<mosaic_0001>
module attributes {stable_mosaic.version = 11 : i64} {
  func.func @_linear_kernel(%arg0: i32, %arg1: i32, %arg2: memref<2x512xbf16, #tpu.memory_space<vmem>>, %arg3: memref<512x128xbf16, #tpu.memory_space<vmem>>, %arg4: memref<1x128xf32, #tpu.memory_space<vmem>>, %arg5: memref<2x128xf32, #tpu.memory_space<vmem>>, %arg6: memref<2x128xf32, #tpu.memory_space<vmem>>) attributes {dimension_semantics = [#tpu.dimension_semantics<parallel>, #tpu.dimension_semantics<arbitrary>], iteration_bounds = array<i64: 2, 1>, scalar_prefetch = 0 : i64, scratch_operands = 1 : i64, tpu.core_type = #tpu.core_type<tc>, window_params = [{transform_indices = @transform_0, window_bounds = array<i64: 2, 512>}, {pipeline_mode = #tpu.pipeline_mode<double_buffered>, transform_indices = @transform_1, window_bounds = array<i64: 512, 128>}, {transform_indices = @transform_2, window_bounds = array<i64: 1, 128>}, {transform_indices = @transform_3, window_bounds = array<i64: 2, 128>}]} {
    %c0_i32 = arith.constant 0 : i32
    %0 = arith.cmpi eq, %arg1, %c0_i32 : i32
    %1 = arith.extui %0 : i1 to i32
    %c0_i32_0 = arith.constant 0 : i32
    %2 = arith.cmpi ne, %1, %c0_i32_0 : i32
    scf.if %2 {
      %cst_10 = arith.constant 0.000000e+00 : f32
      %12 = vector.broadcast %cst_10 : f32 to vector<2x128xf32>
      %c0_11 = arith.constant 0 : index
      %c0_12 = arith.constant 0 : index
      %13 = vector.load %arg6[%c0_11, %c0_12] : memref<2x128xf32, #tpu.memory_space<vmem>>, vector<2x128xf32>
      tpu.vector_store %arg6[%c0_11, %c0_12], %12 {strides = array<i32>} : memref<2x128xf32, #tpu.memory_space<vmem>>, vector<2x128xf32>,
    } else {
    }
    %c0 = arith.constant 0 : index
    %c0_1 = arith.constant 0 : index
    %3 = vector.load %arg6[%c0, %c0_1] : memref<2x128xf32, #tpu.memory_space<vmem>>, vector<2x128xf32>
    %c0_2 = arith.constant 0 : index
    %c0_3 = arith.constant 0 : index
    %4 = vector.load %arg2[%c0_2, %c0_3] : memref<2x512xbf16, #tpu.memory_space<vmem>>, vector<2x512xbf16>
    %c0_4 = arith.constant 0 : index
    %c0_5 = arith.constant 0 : index
    %5 = vector.load %arg3[%c0_4, %c0_5] : memref<512x128xbf16, #tpu.memory_space<vmem>>, vector<512x128xbf16>
    %cst = arith.constant dense<0.000000e+00> : vector<2x128xf32>
    %6 = tpu.matmul %4, %5, %cst {dimension_numbers = #tpu.dot_dimension_numbers<[1], [0], [0], [1], [0, 0, 1, 1], [], []>} : vector<2x512xbf16>, vector<512x128xbf16>, vector<2x128xf32> -> vector<2x128xf32>
    %7 = arith.addf %3, %6 : vector<2x128xf32>
    %c0_6 = arith.constant 0 : index
    %c0_7 = arith.constant 0 : index
    %8 = vector.load %arg6[%c0_6, %c0_7] : memref<2x128xf32, #tpu.memory_space<vmem>>, vector<2x128xf32>
    tpu.vector_store %arg6[%c0_6, %c0_7], %7 {strides = array<i32>} : memref<2x128xf32, #tpu.memory_space<vmem>>, vector<2x128xf32>,
    %c0_i32_8 = arith.constant 0 : i32
    %9 = arith.cmpi eq, %arg1, %c0_i32_8 : i32
    %10 = arith.extui %9 : i1 to i32
    %c0_i32_9 = arith.constant 0 : i32
    %11 = arith.cmpi ne, %10, %c0_i32_9 : i32
    scf.if %11 {
      %c0_10 = arith.constant 0 : index
      %c0_11 = arith.constant 0 : index
      %12 = vector.load %arg6[%c0_10, %c0_11] : memref<2x128xf32, #tpu.memory_space<vmem>>, vector<2x128xf32>
      %c0_12 = arith.constant 0 : index
      %c0_13 = arith.constant 0 : index
      %13 = vector.load %arg4[%c0_12, %c0_13] : memref<1x128xf32, #tpu.memory_space<vmem>>, vector<1x128xf32>
      %14 = vector.broadcast %13 : vector<1x128xf32> to vector<2x128xf32>
      %15 = arith.addf %12, %14 : vector<2x128xf32>
      %c0_14 = arith.constant 0 : index
      %c0_15 = arith.constant 0 : index
      %16 = vector.load %arg5[%c0_14, %c0_15] : memref<2x128xf32, #tpu.memory_space<vmem>>, vector<2x128xf32>
      tpu.vector_store %arg5[%c0_14, %c0_15], %15 {strides = array<i32>} : memref<2x128xf32, #tpu.memory_space<vmem>>, vector<2x128xf32>,
    } else {
    }
    return
  }
  func.func @transform_0(%arg0: i32, %arg1: i32) -> (i32, i32) {
    %c0_i32 = arith.constant 0 : i32
    %c0_i32_0 = arith.constant 0 : i32
    return %c0_i32, %arg1 : i32, i32
  }
  func.func @transform_1(%arg0: i32, %arg1: i32) -> (i32, i32) {
    %c0_i32 = arith.constant 0 : i32
    return %arg1, %arg0 : i32, i32
  }
  func.func @transform_2(%arg0: i32, %arg1: i32) -> (i32, i32) {
    %c0_i32 = arith.constant 0 : i32
    %c0_i32_0 = arith.constant 0 : i32
    return %c0_i32, %arg0 : i32, i32
  }
  func.func @transform_3(%arg0: i32, %arg1: i32) -> (i32, i32) {
    %c0_i32 = arith.constant 0 : i32
    %c0_i32_0 = arith.constant 0 : i32
    return %c0_i32, %arg0 : i32, i32
  }
}

</mosaic_0001>

<llo_original>
// kernel: tpu_custom_call.1
$region0: #{tpu_custom_call.1}
  #allocation0 [shape = 'u32[]', space=smem, size = 0x4, offset = 0x4, fixed_abs, tag = 'smem constant byte address 0x4 - core index']
  #allocation1 [shape = 'u32[144,128]{1,0:T(1,128)}', space=vmem, size = 0x12000, scoped, tag = 'internal scratch']
  #allocation2 [shape = 'f32[2,128]{1,0:T(2,128)}', space=vmem, size = 0x400, scoped, tag = 'scratch operand']
  %s0 = inlined_call_operand.hbm [shape: bf16[2,512], index: 0, kind: input, shape index: {}]
  %s1 = inlined_call_operand.hbm [shape: bf16[512,256], index: 1, kind: input, shape index: {}]
  %s2 = inlined_call_operand.vmem [shape: f32[1,256], index: 2, kind: input, shape index: {}]
  %s3 = inlined_call_operand.hbm [shape: f32[2,256], index: 3, kind: output, shape index: {}]
  %s4 = sld [smem:[#allocation0]]
  $region61: #{tpu_custom_call.1} parent=0
    _
  %s6 = ssub.s32 1, %s4
  %s7 = scalar_select 0, %s6, %s4
  $region1: #{tpu_custom_call.1} parent=0
    #allocation3 [shape = 'u8[2048]{0}', space=vmem, size = 0x800, scoped, tag = 'input window, operand 0, single buffered']
    #allocation4 [shape = 's32[2]{0}', space=sflag, size = 0x8, scoped, tag = 'scoped memory for tpu_custom_call.1']
    #allocation5 [shape = 's32[2]{0}', space=sflag, size = 0x8, scoped, tag = 'scoped memory for tpu_custom_call.1']
    #allocation6 [shape = 'u8[262144]{0}', space=vmem, size = 0x40000, scoped, tag = 'input window, operand 1']
    #allocation7 [shape = 's32[2]{0}', space=sflag, size = 0x8, scoped, tag = 'scoped memory for tpu_custom_call.1']
    #allocation8 [shape = 'u8[2048]{0}', space=vmem, size = 0x800, scoped, tag = 'output window, operand 0']
    %8 = vsyncpa [#allocation4], 0
    %9 = vsyncpa [#allocation7], 0
    %s10 = scalar_lea.sflag [#allocation7], 1
    %11 = vsyncpa %s10, 0
    %12 = vsyncpa [#allocation5], 0
    %s13 = scalar_lea.sflag [#allocation5], 1
    %14 = vsyncpa %s13, 0
    loop: start=0, step=1, limit=4
    $region2: #{tpu_custom_call.1} parent=1 // loop_pre_header
      _
    $region3: #{tpu_custom_call.1} parent=1 // loop_header
      %s16 = sphi 0, %s20
      %p17 = scmp.ge.s32.totalorder %s16, 4
      %s23 = sphi 0, %s35
      %s24 = sphi 0, %s31
      %s25 = sphi 0, %s23
      %s26 = sphi 0, %s24
      %s27 = sphi 0, %s25
      %s28 = sphi 0, %s26
      %s38 = sphi 0, %s40
      %s41 = sphi 0, %s38
      %s42 = sphi 0, %s41
      %s58 = sphi 0, %s42
      %s66 = sphi 0, %s68
      %s69 = sphi 0, %s66
      %s70 = sphi 0, %s69
      %s86 = sphi 0, %s70
      %s92 = sphi 0, %s94
      %s95 = sphi 0, %s92
      %s96 = sphi 0, %s95
      %s112 = sphi 0, %s96
      %s118 = sphi 0, %s120
      %s121 = sphi 0, %s118
      %s122 = sphi 0, %s121
      %s138 = sphi 0, %s122
    $region4: #{tpu_custom_call.1} parent=1 // loop_header_branch
      %19 = sbr.rel (%p17) target = $region8
    $region5: #{tpu_custom_call.1} parent=1 // loop_body
      %s21 = ssub.s32 %s16, 1
      %s22 = ssub.s32 %s16, 2
      %s29 = sadd.s32 1, %s24
      %p30 = scmp.ge.s32.totalorder %s29, 1
      %s31 = scalar_select %p30, 0, %s29
      %s32 = sadd.s32 1, %s23
      %s33 = scalar_select %p30, %s32, %s23
      %p34 = scmp.ge.s32.totalorder %s33, 2
      %s35 = scalar_select %p34, 0, %s33
      %s36 = ssub.s32 %s24, %s31
      %p37 = scmp.eq.s32.totalorder %s36, 0
      %s39 = sadd.s32 %s38, 1
      %s40 = scalar_select %p37, %s38, %s39
      %p43 = pneg %p37
      %p44 = scmp.eq.s32.totalorder %s16, 1
      %p45 = por %p43, %p44
      %p46 = scmp.ne.s32.totalorder %s38, %s41
      %p47 = scmp.eq.s32.totalorder %s16, 0
      %p48 = por %p46, %p47
      %p49 = scmp.ne.s32.totalorder %s38, %s41
      %p50 = scmp.eq.s32.totalorder %s21, 1
      %p51 = por %p49, %p50
      %p52 = scmp.ne.s32.totalorder %s41, %s42
      %p53 = scmp.eq.s32.totalorder %s21, 0
      %p54 = por %p52, %p53
      %p55 = scmp.ne.s32.totalorder %s41, %s42
      %p56 = scmp.eq.s32.totalorder %s22, 1
      %p57 = por %p55, %p56
      %p59 = scmp.ne.s32.totalorder %s42, %s58
      %p60 = scmp.eq.s32.totalorder %s22, 0
      %p61 = por %p59, %p60
      %s62 = ssub.s32 %s24, %s31
      %s63 = ssub.s32 %s23, %s35
      %s64 = sor.u32 %s62, %s63
      %p65 = scmp.eq.s32.totalorder %s64, 0
      %s67 = sadd.s32 %s66, 1
      %s68 = scalar_select %p65, %s66, %s67
      %p71 = pneg %p65
      %p72 = scmp.eq.s32.totalorder %s16, 1
      %p73 = por %p71, %p72
      %p74 = scmp.ne.s32.totalorder %s66, %s69
      %p75 = scmp.eq.s32.totalorder %s16, 0
      %p76 = por %p74, %p75
      %p77 = scmp.ne.s32.totalorder %s66, %s69
      %p78 = scmp.eq.s32.totalorder %s21, 1
      %p79 = por %p77, %p78
      %p80 = scmp.ne.s32.totalorder %s69, %s70
      %p81 = scmp.eq.s32.totalorder %s21, 0
      %p82 = por %p80, %p81
      %p83 = scmp.ne.s32.totalorder %s69, %s70
      %p84 = scmp.eq.s32.totalorder %s22, 1
      %p85 = por %p83, %p84
      %p87 = scmp.ne.s32.totalorder %s70, %s86
      %p88 = scmp.eq.s32.totalorder %s22, 0
      %p89 = por %p87, %p88
      %s90 = ssub.s32 %s23, %s35
      %p91 = scmp.eq.s32.totalorder %s90, 0
      %s93 = sadd.s32 %s92, 1
      %s94 = scalar_select %p91, %s92, %s93
      %p97 = pneg %p91
      %p98 = scmp.eq.s32.totalorder %s16, 1
      %p99 = por %p97, %p98
      %p100 = scmp.ne.s32.totalorder %s92, %s95
      %p101 = scmp.eq.s32.totalorder %s16, 0
      %p102 = por %p100, %p101
      %p103 = scmp.ne.s32.totalorder %s92, %s95
      %p104 = scmp.eq.s32.totalorder %s21, 1
      %p105 = por %p103, %p104
      %p106 = scmp.ne.s32.totalorder %s95, %s96
      %p107 = scmp.eq.s32.totalorder %s21, 0
      %p108 = por %p106, %p107
      %p109 = scmp.ne.s32.totalorder %s95, %s96
      %p110 = scmp.eq.s32.totalorder %s22, 1
      %p111 = por %p109, %p110
      %p113 = scmp.ne.s32.totalorder %s96, %s112
      %p114 = scmp.eq.s32.totalorder %s22, 0
      %p115 = por %p113, %p114
      %s116 = ssub.s32 %s23, %s35
      %p117 = scmp.eq.s32.totalorder %s116, 0
      %s119 = sadd.s32 %s118, 1
      %s120 = scalar_select %p117, %s118, %s119
      %p123 = pneg %p117
      %p124 = scmp.eq.s32.totalorder %s16, 1
      %p125 = por %p123, %p124
      %p126 = scmp.ne.s32.totalorder %s118, %s121
      %p127 = scmp.eq.s32.totalorder %s16, 0
      %p128 = por %p126, %p127
      %p129 = scmp.ne.s32.totalorder %s118, %s121
      %p130 = scmp.eq.s32.totalorder %s21, 1
      %p131 = por %p129, %p130
      %p132 = scmp.ne.s32.totalorder %s121, %s122
      %p133 = scmp.eq.s32.totalorder %s21, 0
      %p134 = por %p132, %p133
      %p135 = scmp.ne.s32.totalorder %s121, %s122
      %p136 = scmp.eq.s32.totalorder %s22, 1
      %p137 = por %p135, %p136
      %p139 = scmp.ne.s32.totalorder %s122, %s138
      %p140 = scmp.eq.s32.totalorder %s22, 0
      %p141 = por %p139, %p140
      %p142 = scmp.le.s32.totalorder 1, %s16
      %p143 = scmp.lt.s32.totalorder %s16, 3
      %p144 = pnand %p142, %p143
      %p145 = pneg %p144
      // Predicated region
      $region9: #{tpu_custom_call.1} parent=5 // pred_check
        _
      $region10: #{tpu_custom_call.1} parent=5 // pred_check_branch
        %147 = sbr.rel (%p144) target = $region12
      $region11: #{tpu_custom_call.1} parent=5 // pred_region
        %s148 = ssub.s32 %s16, 1
        // Predicated region
        $region13: #{tpu_custom_call.1} parent=11 // pred_check
          %p149 = pneg %p54
        $region14: #{tpu_custom_call.1} parent=11 // pred_check_branch
          %151 = sbr.rel (%p149) target = $region16
        $region15: #{tpu_custom_call.1} parent=11 // pred_region
          %s152 = smul.u32 4, %s26
          %s154 = ssub.s32 64, 64
          %155 = vsyncadd [#allocation4], %s154
          %s156 = smul.addr %s152, 16
          %s157 = scalar_lea.hbm %s0, %s156
          %s159 = sshll.u32 [#allocation3], 4
          %s160 = int_to_ptr.vmem [resolvable:$true] %s159
          %162 = dma.hbm_to_vmem [thread:$0]  %s157, 64, %s160, [#allocation4]
        $region16: #{tpu_custom_call.1} parent=11 // pred_fallthru
          _
      $region12: #{tpu_custom_call.1} parent=5 // pred_fallthru
        _
      %p163 = scmp.lt.s32.totalorder %s16, 2
      // Predicated region
      $region17: #{tpu_custom_call.1} parent=5 // pred_check
        %p164 = pneg %p163
      $region18: #{tpu_custom_call.1} parent=5 // pred_check_branch
        %166 = sbr.rel (%p164) target = $region20
      $region19: #{tpu_custom_call.1} parent=5 // pred_region
        // Predicated region
        $region21: #{tpu_custom_call.1} parent=19 // pred_check
          %p167 = pneg %p76
        $region22: #{tpu_custom_call.1} parent=19 // pred_check_branch
          %169 = sbr.rel (%p167) target = $region24
        $region23: #{tpu_custom_call.1} parent=19 // pred_region
          %s170 = sand.u32 %s66, 1
          %s171 = scalar_lea.sflag [#allocation7], %s170
          %s172 = sand.u32 %s66, 1
          %s173 = smul.addr %s172, 256
          %s174 = scalar_lea.vmem [#allocation6], %s173
          %s175 = smul.u32 64, %s24
          %s177 = ssub.s32 4096, 4096
          %178 = vsyncadd %s171, %s177
          %s179 = smul.addr %s175, 2
          %s180 = sadd.s32 %s23, %s179
          %s181 = smul.addr %s180, 64
          %s182 = scalar_lea.hbm %s1, %s181
          %s183 = sshll.u32 %s174, 4
          %s184 = int_to_ptr.vmem [resolvable:$true] %s183
          %189 = dma.hbm_to_vmem [thread:$0]  %s182, 4096, %s184, %s171, 128, 64, 4
        $region24: #{tpu_custom_call.1} parent=19 // pred_fallthru
          _
        // Predicated region
        $region25: #{tpu_custom_call.1} parent=19 // pred_check
          %p190 = pneg %p102
        $region26: #{tpu_custom_call.1} parent=19 // pred_check_branch
          %192 = sbr.rel (%p190) target = $region28
        $region27: #{tpu_custom_call.1} parent=19 // pred_region
          %p193 = scmp.lt.s32.totalorder %s23, 1
          %s194 = scalar_select %p193, %s23, 1
          %s195 = scalar_lea.vmem %s2, %s194
        $region28: #{tpu_custom_call.1} parent=19 // pred_fallthru
          _
      $region20: #{tpu_custom_call.1} parent=5 // pred_fallthru
        _
      %p196 = scmp.le.s32.totalorder 1, %s16
      %p197 = scmp.lt.s32.totalorder %s16, 3
      %p198 = pnand %p196, %p197
      %p199 = pneg %p198
      // Predicated region
      $region29: #{tpu_custom_call.1} parent=5 // pred_check
        _
      $region30: #{tpu_custom_call.1} parent=5 // pred_check_branch
        %201 = sbr.rel (%p198) target = $region32
      $region31: #{tpu_custom_call.1} parent=5 // pred_region
        %s202 = ssub.s32 %s16, 1
        // Predicated region
        $region33: #{tpu_custom_call.1} parent=31 // pred_check
          %p203 = pneg %p54
        $region34: #{tpu_custom_call.1} parent=31 // pred_check_branch
          %205 = sbr.rel (%p203) target = $region36
        $region35: #{tpu_custom_call.1} parent=31 // pred_region
          %206 = dma.done [#allocation4], 64
        $region36: #{tpu_custom_call.1} parent=31 // pred_fallthru
          _
        %s207 = sand.u32 %s69, 1
        %s208 = scalar_lea.sflag [#allocation7], %s207
        %s209 = sand.u32 %s69, 1
        %s210 = smul.addr %s209, 256
        %s211 = scalar_lea.vmem [#allocation6], %s210
        // Predicated region
        $region37: #{tpu_custom_call.1} parent=31 // pred_check
          %p212 = pneg %p82
        $region38: #{tpu_custom_call.1} parent=31 // pred_check_branch
          %214 = sbr.rel (%p212) target = $region40
        $region39: #{tpu_custom_call.1} parent=31 // pred_region
          %215 = dma.done %s208, 4096
        $region40: #{tpu_custom_call.1} parent=31 // pred_fallthru
          _
        %p216 = pneg %p54
        %p217 = pneg %p51
        %s218 = sand.u32 %s69, 1
        %s219 = scalar_lea.sflag [#allocation7], %s218
        %s220 = sand.u32 %s69, 1
        %s221 = smul.addr %s220, 256
        %s222 = scalar_lea.vmem [#allocation6], %s221
        %p223 = pneg %p82
        %p224 = pneg %p79
        %p225 = scmp.lt.s32.totalorder %s25, 1
        %s226 = scalar_select %p225, %s25, 1
        %s227 = scalar_lea.vmem %s2, %s226
        %p228 = pneg %p108
        %p229 = pneg %p105
        %p230 = pneg %p134
        %p231 = pneg %p131
        %s232 = sand.u32 %s121, 1
        %s233 = scalar_lea.sflag [#allocation5], %s232
        %s234 = sand.u32 %s121, 1
        %s235 = smul.addr %s234, 2
        %s236 = scalar_lea.vmem [#allocation8], %s235
        %s237 = smul.u32 4, %s26
        %s238 = smul.u32 64, %s26
        %p239 = scmp.lt.s32.totalorder %s25, 1
        %s240 = scalar_select %p239, %s25, 1
        %s241 = scalar_lea.vmem %s2, %s240
        %p243 = scmp.eq.s32.totalorder %s26, 0
        // Predicated region
        $region41: #{tpu_custom_call.1} parent=31 // pred_check
          %p244 = pneg %p243
        $region42: #{tpu_custom_call.1} parent=31 // pred_check_branch
          %246 = sbr.rel (%p244) target = $region44
        $region43: #{tpu_custom_call.1} parent=31 // pred_region
          %247 = vst [vmem:[#allocation2] sm:$0x3] 0.0
        $region44: #{tpu_custom_call.1} parent=31 // pred_fallthru
          _
        %v248 = vld [vmem:[#allocation2] sm:$0x3]
        %v249 = vld [vmem:[#allocation3] sm:$0xf]
        %v250 = vld [vmem:[%s211] sm:$0xf]
        %v251 = vld [vmem:[%s211 + $0x4] sm:$0xf]
        %v252 = vld [vmem:[%s211 + $0x8] sm:$0xf]
        %v253 = vld [vmem:[%s211 + $0xc] sm:$0xf]
        %v254 = vld [vmem:[%s211 + $0x10] sm:$0xf]
        %v255 = vld [vmem:[%s211 + $0x14] sm:$0xf]
        %v256 = vld [vmem:[%s211 + $0x18] sm:$0xf]
        %v257 = vld [vmem:[%s211 + $0x1c] sm:$0xf]
        %v258 = vld [vmem:[%s211 + $0x20] sm:$0xf]
        %v259 = vld [vmem:[%s211 + $0x24] sm:$0xf]
        %v260 = vld [vmem:[%s211 + $0x28] sm:$0xf]
        %v261 = vld [vmem:[%s211 + $0x2c] sm:$0xf]
        %v262 = vld [vmem:[%s211 + $0x30] sm:$0xf]
        %v263 = vld [vmem:[%s211 + $0x34] sm:$0xf]
        %v264 = vld [vmem:[%s211 + $0x38] sm:$0xf]
        %v265 = vld [vmem:[%s211 + $0x3c] sm:$0xf]
        %v266 = vld [vmem:[%s211 + $0x40] sm:$0xf]
        %v267 = vld [vmem:[%s211 + $0x44] sm:$0xf]
        %v268 = vld [vmem:[%s211 + $0x48] sm:$0xf]
        %v269 = vld [vmem:[%s211 + $0x4c] sm:$0xf]
        %v270 = vld [vmem:[%s211 + $0x50] sm:$0xf]
        %v271 = vld [vmem:[%s211 + $0x54] sm:$0xf]
        %v272 = vld [vmem:[%s211 + $0x58] sm:$0xf]
        %v273 = vld [vmem:[%s211 + $0x5c] sm:$0xf]
        %v274 = vld [vmem:[%s211 + $0x60] sm:$0xf]
        %v275 = vld [vmem:[%s211 + $0x64] sm:$0xf]
        %v276 = vld [vmem:[%s211 + $0x68] sm:$0xf]
        %v277 = vld [vmem:[%s211 + $0x6c] sm:$0xf]
        %v278 = vld [vmem:[%s211 + $0x70] sm:$0xf]
        %v279 = vld [vmem:[%s211 + $0x74] sm:$0xf]
        %v280 = vld [vmem:[%s211 + $0x78] sm:$0xf]
        %v281 = vld [vmem:[%s211 + $0x7c] sm:$0xf]
        %v282 = vld [vmem:[%s211 + $0x80] sm:$0xf]
        %v283 = vld [vmem:[%s211 + $0x84] sm:$0xf]
        %v284 = vld [vmem:[%s211 + $0x88] sm:$0xf]
        %v285 = vld [vmem:[%s211 + $0x8c] sm:$0xf]
        %v286 = vld [vmem:[%s211 + $0x90] sm:$0xf]
        %v287 = vld [vmem:[%s211 + $0x94] sm:$0xf]
        %v288 = vld [vmem:[%s211 + $0x98] sm:$0xf]
        %v289 = vld [vmem:[%s211 + $0x9c] sm:$0xf]
        %v290 = vld [vmem:[%s211 + $0xa0] sm:$0xf]
        %v291 = vld [vmem:[%s211 + $0xa4] sm:$0xf]
        %v292 = vld [vmem:[%s211 + $0xa8] sm:$0xf]
        %v293 = vld [vmem:[%s211 + $0xac] sm:$0xf]
        %v294 = vld [vmem:[%s211 + $0xb0] sm:$0xf]
        %v295 = vld [vmem:[%s211 + $0xb4] sm:$0xf]
        %v296 = vld [vmem:[%s211 + $0xb8] sm:$0xf]
        %v297 = vld [vmem:[%s211 + $0xbc] sm:$0xf]
        %v298 = vld [vmem:[%s211 + $0xc0] sm:$0xf]
        %v299 = vld [vmem:[%s211 + $0xc4] sm:$0xf]
        %v300 = vld [vmem:[%s211 + $0xc8] sm:$0xf]
        %v301 = vld [vmem:[%s211 + $0xcc] sm:$0xf]
        %v302 = vld [vmem:[%s211 + $0xd0] sm:$0xf]
        %v303 = vld [vmem:[%s211 + $0xd4] sm:$0xf]
        %v304 = vld [vmem:[%s211 + $0xd8] sm:$0xf]
        %v305 = vld [vmem:[%s211 + $0xdc] sm:$0xf]
        %v306 = vld [vmem:[%s211 + $0xe0] sm:$0xf]
        %v307 = vld [vmem:[%s211 + $0xe4] sm:$0xf]
        %v308 = vld [vmem:[%s211 + $0xe8] sm:$0xf]
        %v309 = vld [vmem:[%s211 + $0xec] sm:$0xf]
        %v310 = vld [vmem:[%s211 + $0xf0] sm:$0xf]
        %v311 = vld [vmem:[%s211 + $0xf4] sm:$0xf]
        %v312 = vld [vmem:[%s211 + $0xf8] sm:$0xf]
        %v313 = vld [vmem:[%s211 + $0xfc] sm:$0xf]
        %v316 = vunpack.c.l.s4 1966171168
        %v317 = vunpack.c.0.s8 %v316
        %v318 = vlaneseq
        %v319 = vshrl.u32 %v318, 7
        %v320 = vsub.s32 %v317, %v319
        %v321 = vrot.slane %v249, %v320
        %v322 = vcombine.high %v321, %v321
        %v324 = vunpack.c.l.s4 1966171168
        %v325 = vunpack.c.0.s8 %v324
        %v326 = vlaneseq
        %v327 = vshrl.u32 %v326, 7
        %v328 = vsub.s32 %v325, %v327
        %v329 = vrot.slane %v321, %v328
        %v331 = vunpack.c.l.s4 1966171168
        %v332 = vunpack.c.0.s8 %v331
        %v333 = vlaneseq
        %v334 = vshrl.u32 %v333, 7
        %v335 = vsub.s32 %v332, %v334
        %v336 = vrot.slane %v322, %v335
        %v337 = vcombine.high %v329, %v329
        %v338 = vcombine.high %v336, %v336
        %v407 = vunpack.c.l.b16 %v250
        %v408 = vunpack.c.l.b16 %v251
        %v409 = vunpack.c.l.b16 %v252
        %v410 = vunpack.c.l.b16 %v253
        %v411 = vunpack.c.l.b16 %v254
        %v412 = vunpack.c.l.b16 %v255
        %v413 = vunpack.c.l.b16 %v256
        %v414 = vunpack.c.l.b16 %v257
        %v415 = vunpack.c.l.b16 %v258
        %v416 = vunpack.c.l.b16 %v259
        %v417 = vunpack.c.l.b16 %v260
        %v418 = vunpack.c.l.b16 %v261
        %v419 = vunpack.c.l.b16 %v262
        %v420 = vunpack.c.l.b16 %v263
        %v421 = vunpack.c.l.b16 %v264
        %v422 = vunpack.c.l.b16 %v265
        %v423 = vunpack.c.l.b16 %v266
        %v424 = vunpack.c.l.b16 %v267
        %v425 = vunpack.c.l.b16 %v268
        %v426 = vunpack.c.l.b16 %v269
        %v427 = vunpack.c.l.b16 %v270
        %v428 = vunpack.c.l.b16 %v271
        %v429 = vunpack.c.l.b16 %v272
        %v430 = vunpack.c.l.b16 %v273
        %v431 = vunpack.c.l.b16 %v274
        %v432 = vunpack.c.l.b16 %v275
        %v433 = vunpack.c.l.b16 %v276
        %v434 = vunpack.c.l.b16 %v277
        %v435 = vunpack.c.l.b16 %v278
        %v436 = vunpack.c.l.b16 %v279
        %v437 = vunpack.c.l.b16 %v280
        %v438 = vunpack.c.l.b16 %v281
        %v439 = vunpack.c.l.b16 %v282
        %v440 = vunpack.c.l.b16 %v283
        %v441 = vunpack.c.l.b16 %v284
        %v442 = vunpack.c.l.b16 %v285
        %v443 = vunpack.c.l.b16 %v286
        %v444 = vunpack.c.l.b16 %v287
        %v445 = vunpack.c.l.b16 %v288
        %v446 = vunpack.c.l.b16 %v289
        %v447 = vunpack.c.l.b16 %v290
        %v448 = vunpack.c.l.b16 %v291
        %v449 = vunpack.c.l.b16 %v292
        %v450 = vunpack.c.l.b16 %v293
        %v451 = vunpack.c.l.b16 %v294
        %v452 = vunpack.c.l.b16 %v295
        %v453 = vunpack.c.l.b16 %v296
        %v454 = vunpack.c.l.b16 %v297
        %v455 = vunpack.c.l.b16 %v298
        %v456 = vunpack.c.l.b16 %v299
        %v457 = vunpack.c.l.b16 %v300
        %v458 = vunpack.c.l.b16 %v301
        %v459 = vunpack.c.l.b16 %v302
        %v460 = vunpack.c.l.b16 %v303
        %v461 = vunpack.c.l.b16 %v304
        %v462 = vunpack.c.l.b16 %v305
        %v463 = vunpack.c.l.b16 %v306
        %v464 = vunpack.c.l.b16 %v307
        %v465 = vunpack.c.l.b16 %v308
        %v466 = vunpack.c.l.b16 %v309
        %v467 = vunpack.c.l.b16 %v310
        %v468 = vunpack.c.l.b16 %v311
        %v469 = vunpack.c.l.b16 %v312
        %v470 = vunpack.c.l.b16 %v313
        %v471 = vpack.c.b16 %v408, %v407
        %v472 = vpack.c.b16 %v410, %v409
        %v473 = vpack.c.b16 %v412, %v411
        %v474 = vpack.c.b16 %v414, %v413
        %v475 = vpack.c.b16 %v416, %v415
        %v476 = vpack.c.b16 %v418, %v417
        %v477 = vpack.c.b16 %v420, %v419
        %v478 = vpack.c.b16 %v422, %v421
        %v479 = vpack.c.b16 %v424, %v423
        %v480 = vpack.c.b16 %v426, %v425
        %v481 = vpack.c.b16 %v428, %v427
        %v482 = vpack.c.b16 %v430, %v429
        %v483 = vpack.c.b16 %v432, %v431
        %v484 = vpack.c.b16 %v434, %v433
        %v485 = vpack.c.b16 %v436, %v435
        %v486 = vpack.c.b16 %v438, %v437
        %v487 = vpack.c.b16 %v440, %v439
        %v488 = vpack.c.b16 %v442, %v441
        %v489 = vpack.c.b16 %v444, %v443
        %v490 = vpack.c.b16 %v446, %v445
        %v491 = vpack.c.b16 %v448, %v447
        %v492 = vpack.c.b16 %v450, %v449
        %v493 = vpack.c.b16 %v452, %v451
        %v494 = vpack.c.b16 %v454, %v453
        %v495 = vpack.c.b16 %v456, %v455
        %v496 = vpack.c.b16 %v458, %v457
        %v497 = vpack.c.b16 %v460, %v459
        %v498 = vpack.c.b16 %v462, %v461
        %v499 = vpack.c.b16 %v464, %v463
        %v500 = vpack.c.b16 %v466, %v465
        %v501 = vpack.c.b16 %v468, %v467
        %v502 = vpack.c.b16 %v470, %v469
        %535 = vmatprep.subr.bf16.mxu0 0
        %536 = vmatpush1.bf16.msra.mxu0 %v478
        %537 = vmatprep.subr.bf16.mxu0 0
        %538 = vmatpush1.bf16.msra.mxu0 %v477
        %539 = vmatprep.subr.bf16.mxu0 0
        %540 = vmatpush1.bf16.msra.mxu0 %v476
        %541 = vmatprep.subr.bf16.mxu0 0
        %542 = vmatpush1.bf16.msra.mxu0 %v475
        %543 = vmatprep.subr.bf16.mxu0 0
        %544 = vmatpush1.bf16.msra.mxu0 %v474
        %545 = vmatprep.subr.bf16.mxu0 0
        %546 = vmatpush1.bf16.msra.mxu0 %v473
        %547 = vmatprep.subr.bf16.mxu0 0
        %548 = vmatpush1.bf16.msra.mxu0 %v472
        %549 = vmatprep.subr.bf16.mxu0 0
        %550 = vmatpush1.bf16.msra.mxu0 %v471
        %551 = vmatprep.subr.bf16.mxu0 0
        %552 = vmatpush2.bf16.msra.mxu0 %v486
        %553 = vmatprep.subr.bf16.mxu0 0
        %554 = vmatpush2.bf16.msra.mxu0 %v485
        %555 = vmatprep.subr.bf16.mxu0 0
        %556 = vmatpush2.bf16.msra.mxu0 %v484
        %557 = vmatprep.subr.bf16.mxu0 0
        %558 = vmatpush2.bf16.msra.mxu0 %v483
        %559 = vmatprep.subr.bf16.mxu0 0
        %560 = vmatpush2.bf16.msra.mxu0 %v482
        %561 = vmatprep.subr.bf16.mxu0 0
        %562 = vmatpush2.bf16.msra.mxu0 %v481
        %563 = vmatprep.subr.bf16.mxu0 0
        %564 = vmatpush2.bf16.msra.mxu0 %v480
        %565 = vmatprep.subr.bf16.mxu0 0
        %566 = vmatpush2.bf16.msra.mxu0 %v479
        %567 = vmatprep.mubr.bf16.mxu0 %v336
        %568 = vmatmul.mubr.bf16.gmra.mxu0 %v329
        %v569 = vpop.f32.mrf.mxu0
        %v570 = vadd.f32 0.0, %v569
        %v571 = vpop.f32.mrf.mxu0
        %v572 = vpop.f32.mrf.mxu0
        %v573 = vpop.f32.mrf.mxu0
        %574 = vdwg.mxu0
        %575 = vmatprep.subr.bf16.mxu0 0
        %576 = vmatpush1.bf16.msra.mxu0 %v494
        %577 = vmatprep.subr.bf16.mxu0 0
        %578 = vmatpush1.bf16.msra.mxu0 %v493
        %579 = vmatprep.subr.bf16.mxu0 0
        %580 = vmatpush1.bf16.msra.mxu0 %v492
        %581 = vmatprep.subr.bf16.mxu0 0
        %582 = vmatpush1.bf16.msra.mxu0 %v491
        %583 = vmatprep.subr.bf16.mxu0 0
        %584 = vmatpush1.bf16.msra.mxu0 %v490
        %585 = vmatprep.subr.bf16.mxu0 0
        %586 = vmatpush1.bf16.msra.mxu0 %v489
        %587 = vmatprep.subr.bf16.mxu0 0
        %588 = vmatpush1.bf16.msra.mxu0 %v488
        %589 = vmatprep.subr.bf16.mxu0 0
        %590 = vmatpush1.bf16.msra.mxu0 %v487
        %591 = vmatprep.subr.bf16.mxu0 0
        %592 = vmatpush2.bf16.msra.mxu0 %v502
        %593 = vmatprep.subr.bf16.mxu0 0
        %594 = vmatpush2.bf16.msra.mxu0 %v501
        %595 = vmatprep.subr.bf16.mxu0 0
        %596 = vmatpush2.bf16.msra.mxu0 %v500
        %597 = vmatprep.subr.bf16.mxu0 0
        %598 = vmatpush2.bf16.msra.mxu0 %v499
        %599 = vmatprep.subr.bf16.mxu0 0
        %600 = vmatpush2.bf16.msra.mxu0 %v498
        %601 = vmatprep.subr.bf16.mxu0 0
        %602 = vmatpush2.bf16.msra.mxu0 %v497
        %603 = vmatprep.subr.bf16.mxu0 0
        %604 = vmatpush2.bf16.msra.mxu0 %v496
        %605 = vmatprep.subr.bf16.mxu0 0
        %606 = vmatpush2.bf16.msra.mxu0 %v495
        %607 = vmatprep.mubr.bf16.mxu0 %v338
        %608 = vmatmul.mubr.bf16.gmra.mxu0 %v337
        %v609 = vpop.f32.mrf.mxu0
        %v610 = vadd.f32 %v570, %v609
        %v611 = vpop.f32.mrf.mxu0
        %v612 = vpop.f32.mrf.mxu0
        %v613 = vpop.f32.mrf.mxu0
        %614 = vdwg.mxu0
        %v615 = vadd.f32 %v248, %v610
        %616 = vst [vmem:[#allocation2] sm:$0x3] %v615
        // Predicated region
        $region45: #{tpu_custom_call.1} parent=31 // pred_check
          %p617 = pneg %p243
        $region46: #{tpu_custom_call.1} parent=31 // pred_check_branch
          %619 = sbr.rel (%p617) target = $region48
        $region47: #{tpu_custom_call.1} parent=31 // pred_region
          %v620 = vld [vmem:[#allocation2] sm:$0x3]
          %v621 = vld [vmem:[%s241] sm:$0x1]
          %v623 = vlaneseq
          %v624 = vshrl.u32 %v623, 7
          %v625 = vsub.s32 0, %v624
          %v626 = vrot.slane %v621, %v625
          %v628 = vadd.f32 %v620, %v626
          %629 = vst [vmem:[%s236] sm:$0x3] %v628
        $region48: #{tpu_custom_call.1} parent=31 // pred_fallthru
          _
        %s630 = sand.u32 %s121, 1
        %s631 = scalar_lea.sflag [#allocation5], %s630
        %s632 = sand.u32 %s121, 1
        %s633 = smul.addr %s632, 2
        %s634 = scalar_lea.vmem [#allocation8], %s633
        // Predicated region
        $region49: #{tpu_custom_call.1} parent=31 // pred_check
          %p635 = pneg %p131
        $region50: #{tpu_custom_call.1} parent=31 // pred_check_branch
          %637 = sbr.rel (%p635) target = $region52
        $region51: #{tpu_custom_call.1} parent=31 // pred_region
          %s639 = ssub.s32 32, 32
          %640 = vsyncadd %s631, %s639
          %s641 = smul.addr %s25, 32
          %s642 = scalar_lea.hbm %s3, %s641
          %s644 = sshll.u32 %s634, 4
          %s645 = int_to_ptr.vmem [resolvable:$true] %s644
          %647 = dma.vmem_to_hbm [thread:$0]  %s645, 32, %s642, %s631
        $region52: #{tpu_custom_call.1} parent=31 // pred_fallthru
          _
      $region32: #{tpu_custom_call.1} parent=5 // pred_fallthru
        _
      %p648 = scmp.le.s32.totalorder 2, %s16
      // Predicated region
      $region53: #{tpu_custom_call.1} parent=5 // pred_check
        %p649 = pneg %p648
      $region54: #{tpu_custom_call.1} parent=5 // pred_check_branch
        %651 = sbr.rel (%p649) target = $region56
      $region55: #{tpu_custom_call.1} parent=5 // pred_region
        %s652 = ssub.s32 %s16, 2
        // Predicated region
        $region57: #{tpu_custom_call.1} parent=55 // pred_check
          %p653 = pneg %p137
        $region58: #{tpu_custom_call.1} parent=55 // pred_check_branch
          %655 = sbr.rel (%p653) target = $region60
        $region59: #{tpu_custom_call.1} parent=55 // pred_region
          %s656 = sand.u32 %s122, 1
          %s657 = scalar_lea.sflag [#allocation5], %s656
          %s658 = sand.u32 %s122, 1
          %s659 = smul.addr %s658, 2
          %s660 = scalar_lea.vmem [#allocation8], %s659
          %661 = dma.done %s657, 32
        $region60: #{tpu_custom_call.1} parent=55 // pred_fallthru
          _
      $region56: #{tpu_custom_call.1} parent=5 // pred_fallthru
        _
    $region6: #{tpu_custom_call.1} parent=1 // loop_footer
      %s20 = sadd.s32 1, %s16
    $region7: #{tpu_custom_call.1} parent=1 // loop_footer_branch
      %15 = sbr.rel target = $region3
    $region8: #{tpu_custom_call.1} parent=1 // loop_exit
      _
    %662 = vsyncpa [#allocation4], 1
    %s663 = scalar_lea.sflag [#allocation4], 1
    %664 = vsyncpa %s663, 1
    %665 = vsyncpa [#allocation7], 1
    %s666 = scalar_lea.sflag [#allocation7], 1
    %667 = vsyncpa %s666, 1
    %668 = vsyncpa [#allocation5], 1
    %s669 = scalar_lea.sflag [#allocation5], 1
    %670 = vsyncpa %s669, 1

</llo_original>
